<compile_context>
chip_gen: v7x
topology: tpu7x:2x2x1
jax: 0.10.0
libtpu: 0.0.40
codegen_flags: <defaults>
</compile_context>

<pallas_src>
import functools

import jax
import jax.numpy as jnp
from jax.experimental import pallas as pl
from jax.experimental.pallas import tpu as pltpu


LANE = 128
SUBLANE = 8

F1, F2, F3 = 120, 84, 1            # true nn.Linear feature sizes
P1, P2, P3 = LANE, LANE, LANE      # lane-padded feature sizes (128, 128, 128)


def _round_up(n, m):
    return ((n + m - 1) // m) * m


def mlp_decoder_kernel(x_ref, w1_ref, w2_ref, w3_ref, b_ref, o_ref):
    # One batch tile (TB, H) per grid step; weights/biases are VMEM-resident
    # (constant index_maps), all MXU tiles are full 128-lane tiles.
    x = x_ref[...]
    b = b_ref[...]                                   # (3, 128) stacked biases
    h1 = jnp.dot(x, w1_ref[...], preferred_element_type=jnp.float32) + b[0:1, :]
    h1 = jnp.maximum(h1, 0.0)
    h2 = jnp.dot(h1, w2_ref[...], preferred_element_type=jnp.float32) + b[1:2, :]
    h2 = jnp.maximum(h2, 0.0)
    h3 = jnp.dot(h2, w3_ref[...], preferred_element_type=jnp.float32) + b[2:3, :]
    # Only column 0 is the real fc3 output; narrow masked store -> tiny writeback.
    o_ref[...] = h3[:, 0:1].astype(o_ref.dtype)


def prepare_params(params):
    """One-time lane-padding of MLPDecoder params (call OUTSIDE the hot path).

    params: w1 (H,120), b1 (120,), w2 (120,84), b2 (84,), w3 (84,1), b3 (1,)
    with weights stored as (in, out), i.e. y = x @ W + b. Padding is exact:
    padded rows/cols and biases are zero, and ReLU(0)=0.
    """
    f32 = jnp.float32
    H = params["w1"].shape[0]
    w1 = jnp.zeros((H, P1), f32).at[:, :F1].set(params["w1"].astype(f32))
    w2 = jnp.zeros((P1, P2), f32).at[:F1, :F2].set(params["w2"].astype(f32))
    w3 = jnp.zeros((P2, P3), f32).at[:F2, :F3].set(params["w3"].astype(f32))
    b = jnp.zeros((3, P3), f32)
    b = b.at[0, :F1].set(params["b1"].astype(f32))
    b = b.at[1, :F2].set(params["b2"].astype(f32))
    b = b.at[2, :F3].set(params["b3"].astype(f32))
    return {"w1": w1, "w2": w2, "w3": w3, "b": b}


@functools.partial(jax.jit, static_argnames=("tb",))
def mlp_decoder(x, prepared, *, tb=512):
    """x: (B, hidden) float32. prepared: output of prepare_params()."""
    f32 = jnp.float32
    x = x.astype(f32)
    B, H = x.shape

    # Batch tile: multiple of 8 sublanes, large (amortizes per-step overhead),
    # but capped so the grid has >= 2 steps whenever B > 8 (v7x megacore).
    TB = min(tb, _round_up(B, SUBLANE))
    if B > SUBLANE:
        TB = min(TB, _round_up(-(-B // 2), SUBLANE))
    grid = (pl.cdiv(B, TB),)  # ragged final block is masked by Pallas; no jnp.pad

    # VMEM: double-buffered x/out tiles + resident weights + spilled intermediates.
    vmem_bytes = 4 * (2 * TB * H + 2 * TB * 1 + 2 * TB * P1
                      + H * P1 + P1 * P2 + P2 * P3 + 3 * P3)
    vmem_limit = int(min(max(2 * vmem_bytes, 8 << 20), 32 << 20))

    flops = 2 * B * (H * P1 + P1 * P2 + P2 * P3)
    bytes_accessed = 4 * (B * H + B * 1 + H * P1 + P1 * P2 + P2 * P3 + 3 * P3)

    out = pl.pallas_call(
        mlp_decoder_kernel,
        out_shape=jax.ShapeDtypeStruct((B, 1), f32),
        grid=grid,
        in_specs=[
            pl.BlockSpec((TB, H), lambda i: (i, 0)),    # x: tiled over batch
            pl.BlockSpec((H, P1), lambda i: (0, 0)),    # weights: VMEM-resident
            pl.BlockSpec((P1, P2), lambda i: (0, 0)),
            pl.BlockSpec((P2, P3), lambda i: (0, 0)),
            pl.BlockSpec((3, P3), lambda i: (0, 0)),    # stacked biases: resident
        ],
        out_specs=pl.BlockSpec((TB, 1), lambda i: (i, 0)),
        compiler_params=pltpu.CompilerParams(
            dimension_semantics=("parallel",),
            vmem_limit_bytes=vmem_limit,
        ),
        cost_estimate=pl.CostEstimate(
            flops=flops, transcendentals=0, bytes_accessed=bytes_accessed),
    )(x, prepared["w1"], prepared["w2"], prepared["w3"], prepared["b"])

    return out  # (B, 1) — no padding to slice off


def init_params(hidden_size, key):
    """Mirror nn.Linear init: uniform(-1/sqrt(fan_in), 1/sqrt(fan_in))."""
    def linear(key, fan_in, fan_out):
        kw, kb = jax.random.split(key)
        bound = 1.0 / jnp.sqrt(jnp.float32(fan_in))
        w = jax.random.uniform(kw, (fan_in, fan_out), jnp.float32, -bound, bound)
        b = jax.random.uniform(kb, (fan_out,), jnp.float32, -bound, bound)
        return w, b

    k1, k2, k3 = jax.random.split(key, 3)
    w1, b1 = linear(k1, hidden_size, F1)
    w2, b2 = linear(k2, F1, F2)
    w3, b3 = linear(k3, F2, F3)
    return {"w1": w1, "b1": b1, "w2": w2, "b2": b2, "w3": w3, "b3": b3}


def reference(x, p):
    h1 = jnp.maximum(x @ p["w1"] + p["b1"][None, :], 0.0)
    h2 = jnp.maximum(h1 @ p["w2"] + p["b2"][None, :], 0.0)
    return h2 @ p["w3"] + p["b3"][None, :]


if __name__ == "__main__":
    key = jax.random.PRNGKey(0)
    kx, kp = jax.random.split(key)

    # Small shapes consistent with MLPDecoder; ragged batch (13) exercises the
    # pad-free masked final block, hidden=128 keeps x lane-aligned.
    batch, hidden = 13, 128
    x = jax.random.normal(kx, (batch, hidden), jnp.float32)
    params = init_params(hidden, kp)

    prepared = prepare_params(params)      # one-time, outside the hot path
    out = mlp_decoder(x, prepared)
    jax.block_until_ready(out)

    ref = reference(x, params)
    assert out.shape == (batch, 1), out.shape
    assert jnp.allclose(out, ref, atol=1e-5, rtol=1e-5), jnp.max(jnp.abs(out - ref))

    print("KERNEL_OK")
</pallas_src>

<mosaic_0001>
module attributes {stable_mosaic.version = 11 : i64} {
  func.func @mlp_decoder_kernel(%arg0: i32, %arg1: memref<8x128xf32, #tpu.memory_space<vmem>>, %arg2: memref<128x128xf32, #tpu.memory_space<vmem>>, %arg3: memref<128x128xf32, #tpu.memory_space<vmem>>, %arg4: memref<128x128xf32, #tpu.memory_space<vmem>>, %arg5: memref<3x128xf32, #tpu.memory_space<vmem>>, %arg6: memref<8x1xf32, #tpu.memory_space<vmem>>) attributes {dimension_semantics = [#tpu.dimension_semantics<parallel>], iteration_bounds = array<i64: 2>, scalar_prefetch = 0 : i64, scratch_operands = 0 : i64, tpu.core_type = #tpu.core_type<tc>, window_params = [{transform_indices = @transform_0, window_bounds = array<i64: 8, 128>}, {pipeline_mode = #tpu.pipeline_mode<synchronous>, transform_indices = @transform_1, window_bounds = array<i64: 128, 128>}, {pipeline_mode = #tpu.pipeline_mode<synchronous>, transform_indices = @transform_2, window_bounds = array<i64: 128, 128>}, {pipeline_mode = #tpu.pipeline_mode<synchronous>, transform_indices = @transform_3, window_bounds = array<i64: 128, 128>}, {pipeline_mode = #tpu.pipeline_mode<synchronous>, transform_indices = @transform_4, window_bounds = array<i64: 3, 128>}, {transform_indices = @transform_5, window_bounds = array<i64: 8, 1>}]} {
    %c0 = arith.constant 0 : index
    %c0_0 = arith.constant 0 : index
    %0 = vector.load %arg1[%c0, %c0_0] : memref<8x128xf32, #tpu.memory_space<vmem>>, vector<8x128xf32>
    %c0_1 = arith.constant 0 : index
    %c0_2 = arith.constant 0 : index
    %1 = vector.load %arg5[%c0_1, %c0_2] : memref<3x128xf32, #tpu.memory_space<vmem>>, vector<3x128xf32>
    %c0_3 = arith.constant 0 : index
    %c0_4 = arith.constant 0 : index
    %2 = vector.load %arg2[%c0_3, %c0_4] : memref<128x128xf32, #tpu.memory_space<vmem>>, vector<128x128xf32>
    %cst = arith.constant dense<0.000000e+00> : vector<8x128xf32>
    %3 = tpu.matmul %0, %2, %cst {dimension_numbers = #tpu.dot_dimension_numbers<[1], [0], [0], [1], [0, 0, 1, 1], [], []>} : vector<8x128xf32>, vector<128x128xf32>, vector<8x128xf32> -> vector<8x128xf32>
    %4 = vector.extract_strided_slice %1 {offsets = [0, 0], sizes = [1, 128], strides = [1, 1]} : vector<3x128xf32> to vector<1x128xf32>
    %5 = vector.broadcast %4 : vector<1x128xf32> to vector<8x128xf32>
    %6 = arith.addf %3, %5 : vector<8x128xf32>
    %cst_5 = arith.constant 0.000000e+00 : f32
    %7 = vector.broadcast %cst_5 : f32 to vector<8x128xf32>
    %8 = arith.maximumf %6, %7 : vector<8x128xf32>
    %c0_6 = arith.constant 0 : index
    %c0_7 = arith.constant 0 : index
    %9 = vector.load %arg3[%c0_6, %c0_7] : memref<128x128xf32, #tpu.memory_space<vmem>>, vector<128x128xf32>
    %cst_8 = arith.constant dense<0.000000e+00> : vector<8x128xf32>
    %10 = tpu.matmul %8, %9, %cst_8 {dimension_numbers = #tpu.dot_dimension_numbers<[1], [0], [0], [1], [0, 0, 1, 1], [], []>} : vector<8x128xf32>, vector<128x128xf32>, vector<8x128xf32> -> vector<8x128xf32>
    %11 = vector.extract_strided_slice %1 {offsets = [1, 0], sizes = [1, 128], strides = [1, 1]} : vector<3x128xf32> to vector<1x128xf32>
    %12 = vector.broadcast %11 : vector<1x128xf32> to vector<8x128xf32>
    %13 = arith.addf %10, %12 : vector<8x128xf32>
    %cst_9 = arith.constant 0.000000e+00 : f32
    %14 = vector.broadcast %cst_9 : f32 to vector<8x128xf32>
    %15 = arith.maximumf %13, %14 : vector<8x128xf32>
    %c0_10 = arith.constant 0 : index
    %c0_11 = arith.constant 0 : index
    %16 = vector.load %arg4[%c0_10, %c0_11] : memref<128x128xf32, #tpu.memory_space<vmem>>, vector<128x128xf32>
    %cst_12 = arith.constant dense<0.000000e+00> : vector<8x128xf32>
    %17 = tpu.matmul %15, %16, %cst_12 {dimension_numbers = #tpu.dot_dimension_numbers<[1], [0], [0], [1], [0, 0, 1, 1], [], []>} : vector<8x128xf32>, vector<128x128xf32>, vector<8x128xf32> -> vector<8x128xf32>
    %18 = vector.extract_strided_slice %1 {offsets = [2, 0], sizes = [1, 128], strides = [1, 1]} : vector<3x128xf32> to vector<1x128xf32>
    %19 = vector.broadcast %18 : vector<1x128xf32> to vector<8x128xf32>
    %20 = arith.addf %17, %19 : vector<8x128xf32>
    %21 = vector.extract_strided_slice %20 {offsets = [0, 0], sizes = [8, 1], strides = [1, 1]} : vector<8x128xf32> to vector<8x1xf32>
    %c0_13 = arith.constant 0 : index
    %c0_14 = arith.constant 0 : index
    %22 = vector.load %arg6[%c0_13, %c0_14] : memref<8x1xf32, #tpu.memory_space<vmem>>, vector<8x1xf32>
    tpu.vector_store %arg6[%c0_13, %c0_14], %21 {strides = array<i32>} : memref<8x1xf32, #tpu.memory_space<vmem>>, vector<8x1xf32>,
    return
  }
  func.func @transform_0(%arg0: i32) -> (i32, i32) {
    %c0_i32 = arith.constant 0 : i32
    %c0_i32_0 = arith.constant 0 : i32
    return %arg0, %c0_i32 : i32, i32
  }
  func.func @transform_1(%arg0: i32) -> (i32, i32) {
    %c0_i32 = arith.constant 0 : i32
    %c0_i32_0 = arith.constant 0 : i32
    %c0_i32_1 = arith.constant 0 : i32
    return %c0_i32, %c0_i32_0 : i32, i32
  }
  func.func @transform_2(%arg0: i32) -> (i32, i32) {
    %c0_i32 = arith.constant 0 : i32
    %c0_i32_0 = arith.constant 0 : i32
    %c0_i32_1 = arith.constant 0 : i32
    return %c0_i32, %c0_i32_0 : i32, i32
  }
  func.func @transform_3(%arg0: i32) -> (i32, i32) {
    %c0_i32 = arith.constant 0 : i32
    %c0_i32_0 = arith.constant 0 : i32
    %c0_i32_1 = arith.constant 0 : i32
    return %c0_i32, %c0_i32_0 : i32, i32
  }
  func.func @transform_4(%arg0: i32) -> (i32, i32) {
    %c0_i32 = arith.constant 0 : i32
    %c0_i32_0 = arith.constant 0 : i32
    %c0_i32_1 = arith.constant 0 : i32
    return %c0_i32, %c0_i32_0 : i32, i32
  }
  func.func @transform_5(%arg0: i32) -> (i32, i32) {
    %c0_i32 = arith.constant 0 : i32
    %c0_i32_0 = arith.constant 0 : i32
    return %arg0, %c0_i32 : i32, i32
  }
}

</mosaic_0001>

<llo_original>
// kernel: mlp_decoder.1
$region0: #{mlp_decoder.1}
  #allocation0 [shape = 'u32[]', space=smem, size = 0x4, offset = 0x4, fixed_abs, tag = 'smem constant byte address 0x4 - core index']
  #allocation1 [shape = 'u32[144,128]{1,0:T(1,128)}', space=vmem, size = 0x12000, scoped, tag = 'internal scratch']
  %s0 = inlined_call_operand.hbm [shape: f32[13,128], index: 0, kind: input, shape index: {}]
  %s1 = inlined_call_operand.hbm [shape: f32[128,128], index: 1, kind: input, shape index: {}]
  %s2 = inlined_call_operand.hbm [shape: f32[128,128], index: 2, kind: input, shape index: {}]
  %s3 = inlined_call_operand.hbm [shape: f32[128,128], index: 3, kind: input, shape index: {}]
  %s4 = inlined_call_operand.hbm [shape: f32[3,128], index: 4, kind: input, shape index: {}]
  %s5 = inlined_call_operand.vmem [shape: f32[13,1], index: 5, kind: output, shape index: {}]
  %s6 = sld [smem:[#allocation0]]
  $region73: #{mlp_decoder.1} parent=0
    _
  %s8 = ssub.s32 1, %s6
  %s9 = scalar_select 0, %s8, %s6
  $region1: #{mlp_decoder.1} parent=0
    #allocation2 [shape = 'u8[8192]{0}', space=vmem, size = 0x2000, scoped, tag = 'input window, operand 0']
    #allocation3 [shape = 's32[2]{0}', space=sflag, size = 0x8, scoped, tag = 'scoped memory for mlp_decoder.1']
    #allocation4 [shape = 'u8[65536]{0}', space=vmem, size = 0x10000, scoped, tag = 'input window, operand 1, single buffered']
    #allocation5 [shape = 's32[1]{0}', space=sflag, size = 0x4, scoped, tag = 'scoped memory for mlp_decoder.1']
    #allocation6 [shape = 'u8[65536]{0}', space=vmem, size = 0x10000, scoped, tag = 'input window, operand 2, single buffered']
    #allocation7 [shape = 'u8[65536]{0}', space=vmem, size = 0x10000, scoped, tag = 'input window, operand 3, single buffered']
    #allocation8 [shape = 's32[1]{0}', space=sflag, size = 0x4, scoped, tag = 'scoped memory for mlp_decoder.1']
    #allocation9 [shape = 'u8[2048]{0}', space=vmem, size = 0x800, scoped, tag = 'input window, operand 4, single buffered']
    %10 = vsyncpa [#allocation3], 0
    %s11 = scalar_lea.sflag [#allocation3], 1
    %12 = vsyncpa %s11, 0
    %13 = vsyncpa [#allocation5], 0
    %14 = vsyncpa [#allocation8], 0
    loop: start=0, step=1, limit=4
    $region2: #{mlp_decoder.1} parent=1 // loop_pre_header
      _
    $region3: #{mlp_decoder.1} parent=1 // loop_header
      %s16 = sphi 0, %s20
      %p17 = scmp.ge.s32.totalorder %s16, 4
      %s26 = sphi 0, %s28
      %s29 = sphi 0, %s26
      %s30 = sphi 0, %s29
      %s46 = sphi 0, %s30
      %s50 = sphi 0, %s50
      %s52 = sphi 0, %s50
      %s53 = sphi 0, %s52
      %s67 = sphi 0, %s53
      %s71 = sphi 0, %s71
      %s73 = sphi 0, %s71
      %s74 = sphi 0, %s73
      %s88 = sphi 0, %s74
      %s92 = sphi 0, %s92
      %s94 = sphi 0, %s92
      %s95 = sphi 0, %s94
      %s109 = sphi 0, %s95
      %s113 = sphi 0, %s113
      %s115 = sphi 0, %s113
      %s116 = sphi 0, %s115
      %s130 = sphi 0, %s116
      %s136 = sphi 0, %s138
      %s139 = sphi 0, %s136
      %s140 = sphi 0, %s139
      %s156 = sphi 0, %s140
    $region4: #{mlp_decoder.1} parent=1 // loop_header_branch
      %19 = sbr.rel (%p17) target = $region8
    $region5: #{mlp_decoder.1} parent=1 // loop_body
      %s21 = ssub.s32 %s16, 1
      %s22 = ssub.s32 %s16, 2
      %s23 = sadd.s32 %s16, 1
      %s24 = ssub.s32 %s16, %s23
      %p25 = scmp.eq.s32.totalorder %s24, 0
      %s27 = sadd.s32 %s26, 1
      %s28 = scalar_select %p25, %s26, %s27
      %p31 = pneg %p25
      %p32 = scmp.eq.s32.totalorder %s16, 1
      %p33 = por %p31, %p32
      %p34 = scmp.ne.s32.totalorder %s26, %s29
      %p35 = scmp.eq.s32.totalorder %s16, 0
      %p36 = por %p34, %p35
      %p37 = scmp.ne.s32.totalorder %s26, %s29
      %p38 = scmp.eq.s32.totalorder %s21, 1
      %p39 = por %p37, %p38
      %p40 = scmp.ne.s32.totalorder %s29, %s30
      %p41 = scmp.eq.s32.totalorder %s21, 0
      %p42 = por %p40, %p41
      %p43 = scmp.ne.s32.totalorder %s29, %s30
      %p44 = scmp.eq.s32.totalorder %s22, 1
      %p45 = por %p43, %p44
      %p47 = scmp.ne.s32.totalorder %s30, %s46
      %p48 = scmp.eq.s32.totalorder %s22, 0
      %p49 = por %p47, %p48
      %s51 = sadd.s32 %s50, 1
      %p54 = scmp.eq.s32.totalorder %s16, 1
      %p55 = scmp.ne.s32.totalorder %s50, %s52
      %p56 = scmp.eq.s32.totalorder %s16, 0
      %p57 = por %p55, %p56
      %p58 = scmp.ne.s32.totalorder %s50, %s52
      %p59 = scmp.eq.s32.totalorder %s21, 1
      %p60 = por %p58, %p59
      %p61 = scmp.ne.s32.totalorder %s52, %s53
      %p62 = scmp.eq.s32.totalorder %s21, 0
      %p63 = por %p61, %p62
      %p64 = scmp.ne.s32.totalorder %s52, %s53
      %p65 = scmp.eq.s32.totalorder %s22, 1
      %p66 = por %p64, %p65
      %p68 = scmp.ne.s32.totalorder %s53, %s67
      %p69 = scmp.eq.s32.totalorder %s22, 0
      %p70 = por %p68, %p69
      %s72 = sadd.s32 %s71, 1
      %p75 = scmp.eq.s32.totalorder %s16, 1
      %p76 = scmp.ne.s32.totalorder %s71, %s73
      %p77 = scmp.eq.s32.totalorder %s16, 0
      %p78 = por %p76, %p77
      %p79 = scmp.ne.s32.totalorder %s71, %s73
      %p80 = scmp.eq.s32.totalorder %s21, 1
      %p81 = por %p79, %p80
      %p82 = scmp.ne.s32.totalorder %s73, %s74
      %p83 = scmp.eq.s32.totalorder %s21, 0
      %p84 = por %p82, %p83
      %p85 = scmp.ne.s32.totalorder %s73, %s74
      %p86 = scmp.eq.s32.totalorder %s22, 1
      %p87 = por %p85, %p86
      %p89 = scmp.ne.s32.totalorder %s74, %s88
      %p90 = scmp.eq.s32.totalorder %s22, 0
      %p91 = por %p89, %p90
      %s93 = sadd.s32 %s92, 1
      %p96 = scmp.eq.s32.totalorder %s16, 1
      %p97 = scmp.ne.s32.totalorder %s92, %s94
      %p98 = scmp.eq.s32.totalorder %s16, 0
      %p99 = por %p97, %p98
      %p100 = scmp.ne.s32.totalorder %s92, %s94
      %p101 = scmp.eq.s32.totalorder %s21, 1
      %p102 = por %p100, %p101
      %p103 = scmp.ne.s32.totalorder %s94, %s95
      %p104 = scmp.eq.s32.totalorder %s21, 0
      %p105 = por %p103, %p104
      %p106 = scmp.ne.s32.totalorder %s94, %s95
      %p107 = scmp.eq.s32.totalorder %s22, 1
      %p108 = por %p106, %p107
      %p110 = scmp.ne.s32.totalorder %s95, %s109
      %p111 = scmp.eq.s32.totalorder %s22, 0
      %p112 = por %p110, %p111
      %s114 = sadd.s32 %s113, 1
      %p117 = scmp.eq.s32.totalorder %s16, 1
      %p118 = scmp.ne.s32.totalorder %s113, %s115
      %p119 = scmp.eq.s32.totalorder %s16, 0
      %p120 = por %p118, %p119
      %p121 = scmp.ne.s32.totalorder %s113, %s115
      %p122 = scmp.eq.s32.totalorder %s21, 1
      %p123 = por %p121, %p122
      %p124 = scmp.ne.s32.totalorder %s115, %s116
      %p125 = scmp.eq.s32.totalorder %s21, 0
      %p126 = por %p124, %p125
      %p127 = scmp.ne.s32.totalorder %s115, %s116
      %p128 = scmp.eq.s32.totalorder %s22, 1
      %p129 = por %p127, %p128
      %p131 = scmp.ne.s32.totalorder %s116, %s130
      %p132 = scmp.eq.s32.totalorder %s22, 0
      %p133 = por %p131, %p132
      %s134 = ssub.s32 %s16, %s23
      %p135 = scmp.eq.s32.totalorder %s134, 0
      %s137 = sadd.s32 %s136, 1
      %s138 = scalar_select %p135, %s136, %s137
      %p141 = pneg %p135
      %p142 = scmp.eq.s32.totalorder %s16, 1
      %p143 = por %p141, %p142
      %p144 = scmp.ne.s32.totalorder %s136, %s139
      %p145 = scmp.eq.s32.totalorder %s16, 0
      %p146 = por %p144, %p145
      %p147 = scmp.ne.s32.totalorder %s136, %s139
      %p148 = scmp.eq.s32.totalorder %s21, 1
      %p149 = por %p147, %p148
      %p150 = scmp.ne.s32.totalorder %s139, %s140
      %p151 = scmp.eq.s32.totalorder %s21, 0
      %p152 = por %p150, %p151
      %p153 = scmp.ne.s32.totalorder %s139, %s140
      %p154 = scmp.eq.s32.totalorder %s22, 1
      %p155 = por %p153, %p154
      %p157 = scmp.ne.s32.totalorder %s140, %s156
      %p158 = scmp.eq.s32.totalorder %s22, 0
      %p159 = por %p157, %p158
      %p160 = scmp.le.s32.totalorder 1, %s16
      %p161 = scmp.lt.s32.totalorder %s16, 3
      %p162 = pnand %p160, %p161
      %p163 = pneg %p162
      // Predicated region
      $region9: #{mlp_decoder.1} parent=5 // pred_check
        _
      $region10: #{mlp_decoder.1} parent=5 // pred_check_branch
        %165 = sbr.rel (%p162) target = $region12
      $region11: #{mlp_decoder.1} parent=5 // pred_region
        %s166 = ssub.s32 %s16, 1
        // Predicated region
        $region13: #{mlp_decoder.1} parent=11 // pred_check
          %p167 = pneg %p63
        $region14: #{mlp_decoder.1} parent=11 // pred_check_branch
          %169 = sbr.rel (%p167) target = $region16
        $region15: #{mlp_decoder.1} parent=11 // pred_region
          %s171 = ssub.s32 2048, 2048
          %172 = vsyncadd [#allocation5], %s171
          %s173 = sshll.u32 [#allocation4], 4
          %s174 = int_to_ptr.vmem [resolvable:$true] %s173
          %179 = dma.hbm_to_vmem [thread:$0]  %s1, 2048, %s174, [#allocation5], 128, 128, 8
        $region16: #{mlp_decoder.1} parent=11 // pred_fallthru
          _
        // Predicated region
        $region17: #{mlp_decoder.1} parent=11 // pred_check
          %p180 = pneg %p84
        $region18: #{mlp_decoder.1} parent=11 // pred_check_branch
          %182 = sbr.rel (%p180) target = $region20
        $region19: #{mlp_decoder.1} parent=11 // pred_region
          %s184 = ssub.s32 2048, 2048
          %185 = vsyncadd [#allocation5], %s184
          %s186 = sshll.u32 [#allocation6], 4
          %s187 = int_to_ptr.vmem [resolvable:$true] %s186
          %192 = dma.hbm_to_vmem [thread:$0]  %s2, 2048, %s187, [#allocation5], 128, 128, 8
        $region20: #{mlp_decoder.1} parent=11 // pred_fallthru
          _
        // Predicated region
        $region21: #{mlp_decoder.1} parent=11 // pred_check
          %p193 = pneg %p105
        $region22: #{mlp_decoder.1} parent=11 // pred_check_branch
          %195 = sbr.rel (%p193) target = $region24
        $region23: #{mlp_decoder.1} parent=11 // pred_region
          %s197 = ssub.s32 2048, 2048
          %198 = vsyncadd [#allocation8], %s197
          %s199 = sshll.u32 [#allocation7], 4
          %s200 = int_to_ptr.vmem [resolvable:$true] %s199
          %205 = dma.hbm_to_vmem [thread:$0]  %s3, 2048, %s200, [#allocation8], 128, 128, 8
        $region24: #{mlp_decoder.1} parent=11 // pred_fallthru
          _
        // Predicated region
        $region25: #{mlp_decoder.1} parent=11 // pred_check
          %p206 = pneg %p126
        $region26: #{mlp_decoder.1} parent=11 // pred_check_branch
          %208 = sbr.rel (%p206) target = $region28
        $region27: #{mlp_decoder.1} parent=11 // pred_region
          %s210 = ssub.s32 64, 64
          %211 = vsyncadd [#allocation8], %s210
          %s213 = sshll.u32 [#allocation9], 4
          %s214 = int_to_ptr.vmem [resolvable:$true] %s213
          %216 = dma.hbm_to_vmem [thread:$0]  %s4, 64, %s214, [#allocation8]
        $region28: #{mlp_decoder.1} parent=11 // pred_fallthru
          _
      $region12: #{mlp_decoder.1} parent=5 // pred_fallthru
        _
      %p217 = scmp.lt.s32.totalorder %s16, 2
      // Predicated region
      $region29: #{mlp_decoder.1} parent=5 // pred_check
        %p218 = pneg %p217
      $region30: #{mlp_decoder.1} parent=5 // pred_check_branch
        %220 = sbr.rel (%p218) target = $region32
      $region31: #{mlp_decoder.1} parent=5 // pred_region
        // Predicated region
        $region33: #{mlp_decoder.1} parent=31 // pred_check
          %p221 = pneg %p36
        $region34: #{mlp_decoder.1} parent=31 // pred_check_branch
          %223 = sbr.rel (%p221) target = $region36
        $region35: #{mlp_decoder.1} parent=31 // pred_region
          %s224 = sand.u32 %s26, 1
          %s225 = scalar_lea.sflag [#allocation3], %s224
          %s226 = sand.u32 %s26, 1
          %s227 = smul.addr %s226, 8
          %s228 = scalar_lea.vmem [#allocation2], %s227
          %s230 = ssub.s32 128, 128
          %231 = vsyncadd %s225, %s230
          %s232 = smul.addr %s16, 128
          %s233 = scalar_lea.hbm %s0, %s232
          %s235 = sshll.u32 %s228, 4
          %s236 = int_to_ptr.vmem [resolvable:$true] %s235
          %238 = dma.hbm_to_vmem [thread:$0]  %s233, 128, %s236, %s225
        $region36: #{mlp_decoder.1} parent=31 // pred_fallthru
          _
      $region32: #{mlp_decoder.1} parent=5 // pred_fallthru
        _
      %p239 = scmp.le.s32.totalorder 1, %s16
      %p240 = scmp.lt.s32.totalorder %s16, 3
      %p241 = pnand %p239, %p240
      %p242 = pneg %p241
      // Predicated region
      $region37: #{mlp_decoder.1} parent=5 // pred_check
        _
      $region38: #{mlp_decoder.1} parent=5 // pred_check_branch
        %244 = sbr.rel (%p241) target = $region40
      $region39: #{mlp_decoder.1} parent=5 // pred_region
        %s245 = ssub.s32 %s16, 1
        %s246 = sand.u32 %s29, 1
        %s247 = scalar_lea.sflag [#allocation3], %s246
        %s248 = sand.u32 %s29, 1
        %s249 = smul.addr %s248, 8
        %s250 = scalar_lea.vmem [#allocation2], %s249
        // Predicated region
        $region41: #{mlp_decoder.1} parent=39 // pred_check
          %p251 = pneg %p42
        $region42: #{mlp_decoder.1} parent=39 // pred_check_branch
          %253 = sbr.rel (%p251) target = $region44
        $region43: #{mlp_decoder.1} parent=39 // pred_region
          %254 = dma.done %s247, 128
        $region44: #{mlp_decoder.1} parent=39 // pred_fallthru
          _
        // Predicated region
        $region45: #{mlp_decoder.1} parent=39 // pred_check
          %p255 = pneg %p63
        $region46: #{mlp_decoder.1} parent=39 // pred_check_branch
          %257 = sbr.rel (%p255) target = $region48
        $region47: #{mlp_decoder.1} parent=39 // pred_region
          %258 = dma.done [#allocation5], 2048
        $region48: #{mlp_decoder.1} parent=39 // pred_fallthru
          _
        // Predicated region
        $region49: #{mlp_decoder.1} parent=39 // pred_check
          %p259 = pneg %p84
        $region50: #{mlp_decoder.1} parent=39 // pred_check_branch
          %261 = sbr.rel (%p259) target = $region52
        $region51: #{mlp_decoder.1} parent=39 // pred_region
          %262 = dma.done [#allocation5], 2048
        $region52: #{mlp_decoder.1} parent=39 // pred_fallthru
          _
        // Predicated region
        $region53: #{mlp_decoder.1} parent=39 // pred_check
          %p263 = pneg %p105
        $region54: #{mlp_decoder.1} parent=39 // pred_check_branch
          %265 = sbr.rel (%p263) target = $region56
        $region55: #{mlp_decoder.1} parent=39 // pred_region
          %266 = dma.done [#allocation8], 2048
        $region56: #{mlp_decoder.1} parent=39 // pred_fallthru
          _
        // Predicated region
        $region57: #{mlp_decoder.1} parent=39 // pred_check
          %p267 = pneg %p126
        $region58: #{mlp_decoder.1} parent=39 // pred_check_branch
          %269 = sbr.rel (%p267) target = $region60
        $region59: #{mlp_decoder.1} parent=39 // pred_region
          %270 = dma.done [#allocation8], 64
        $region60: #{mlp_decoder.1} parent=39 // pred_fallthru
          _
        %s271 = sand.u32 %s29, 1
        %s272 = scalar_lea.sflag [#allocation3], %s271
        %s273 = sand.u32 %s29, 1
        %s274 = smul.addr %s273, 8
        %s275 = scalar_lea.vmem [#allocation2], %s274
        %p276 = pneg %p42
        %p277 = pneg %p39
        %p278 = pneg %p63
        %p279 = pneg %p60
        %p280 = pneg %p84
        %p281 = pneg %p81
        %p282 = pneg %p105
        %p283 = pneg %p102
        %p284 = pneg %p126
        %p285 = pneg %p123
        %p286 = pneg %p152
        %p287 = pneg %p149
        %p288 = scmp.lt.s32.totalorder %s21, 1
        %s289 = scalar_select %p288, %s21, 1
        %s290 = smul.addr %s289, 8
        %s291 = scalar_lea.vmem %s5, %s290
        %p292 = scmp.lt.s32.totalorder %s21, 1
        %s293 = scalar_select %p292, %s21, 1
        %s294 = smul.addr %s293, 8
        %s295 = scalar_lea.vmem %s5, %s294
        %v296 = vld [vmem:[%s250] sm:$0xff]
        %v297 = vld [vmem:[#allocation9] sm:$0x7]
        %v298 = vld [vmem:[#allocation4] sm:$0xff]
        %v299 = vld [vmem:[#allocation4 + $0x8] sm:$0xff]
        %v300 = vld [vmem:[#allocation4 + $0x10] sm:$0xff]
        %v301 = vld [vmem:[#allocation4 + $0x18] sm:$0xff]
        %v302 = vld [vmem:[#allocation4 + $0x20] sm:$0xff]
        %v303 = vld [vmem:[#allocation4 + $0x28] sm:$0xff]
        %v304 = vld [vmem:[#allocation4 + $0x30] sm:$0xff]
        %v305 = vld [vmem:[#allocation4 + $0x38] sm:$0xff]
        %v306 = vld [vmem:[#allocation4 + $0x40] sm:$0xff]
        %v307 = vld [vmem:[#allocation4 + $0x48] sm:$0xff]
        %v308 = vld [vmem:[#allocation4 + $0x50] sm:$0xff]
        %v309 = vld [vmem:[#allocation4 + $0x58] sm:$0xff]
        %v310 = vld [vmem:[#allocation4 + $0x60] sm:$0xff]
        %v311 = vld [vmem:[#allocation4 + $0x68] sm:$0xff]
        %v312 = vld [vmem:[#allocation4 + $0x70] sm:$0xff]
        %v313 = vld [vmem:[#allocation4 + $0x78] sm:$0xff]
        %v314 = vlaneseq
        %v315 = vshrl.u32 %v314, 7
        %v316 = vsub.s32 0, %v315
        %v317 = vrot.slane %v297, %v316
        %318 = vmatprep.subr.mxu0 0.0
        %319 = vmatpush1.msra.mxu0 %v298
        %320 = vmatprep.subr.mxu0 0.0
        %321 = vmatpush1.msra.mxu0 %v299
        %322 = vmatprep.subr.mxu0 0.0
        %323 = vmatpush1.msra.mxu0 %v300
        %324 = vmatprep.subr.mxu0 0.0
        %325 = vmatpush1.msra.mxu0 %v301
        %326 = vmatprep.subr.mxu0 0.0
        %327 = vmatpush1.msra.mxu0 %v302
        %328 = vmatprep.subr.mxu0 0.0
        %329 = vmatpush1.msra.mxu0 %v303
        %330 = vmatprep.subr.mxu0 0.0
        %331 = vmatpush1.msra.mxu0 %v304
        %332 = vmatprep.subr.mxu0 0.0
        %333 = vmatpush1.msra.mxu0 %v305
        %334 = vmatprep.subr.mxu0 0.0
        %335 = vmatpush1.msra.mxu0 %v306
        %336 = vmatprep.subr.mxu0 0.0
        %337 = vmatpush1.msra.mxu0 %v307
        %338 = vmatprep.subr.mxu0 0.0
        %339 = vmatpush1.msra.mxu0 %v308
        %340 = vmatprep.subr.mxu0 0.0
        %341 = vmatpush1.msra.mxu0 %v309
        %342 = vmatprep.subr.mxu0 0.0
        %343 = vmatpush1.msra.mxu0 %v310
        %344 = vmatprep.subr.mxu0 0.0
        %345 = vmatpush1.msra.mxu0 %v311
        %346 = vmatprep.subr.mxu0 0.0
        %347 = vmatpush1.msra.mxu0 %v312
        %348 = vmatprep.subr.mxu0 0.0
        %349 = vmatpush1.msra.mxu0 %v313
        %350 = vmatprep.subr.mxu0 0.0
        %351 = vmatpush1.msra.mxu0 0.0
        %352 = vmatprep.subr.mxu0 0.0
        %353 = vmatpush1.msra.mxu0 0.0
        %354 = vmatprep.subr.mxu0 0.0
        %355 = vmatpush1.msra.mxu0 0.0
        %356 = vmatprep.subr.mxu0 0.0
        %357 = vmatpush1.msra.mxu0 0.0
        %358 = vmatprep.subr.mxu0 0.0
        %359 = vmatpush1.msra.mxu0 0.0
        %360 = vmatprep.subr.mxu0 0.0
        %361 = vmatpush1.msra.mxu0 0.0
        %362 = vmatprep.subr.mxu0 0.0
        %363 = vmatpush1.msra.mxu0 0.0
        %364 = vmatprep.subr.mxu0 0.0
        %365 = vmatpush1.msra.mxu0 0.0
        %366 = vmatprep.subr.mxu0 0.0
        %367 = vmatpush1.msra.mxu0 0.0
        %368 = vmatprep.subr.mxu0 0.0
        %369 = vmatpush1.msra.mxu0 0.0
        %370 = vmatprep.subr.mxu0 0.0
        %371 = vmatpush1.msra.mxu0 0.0
        %372 = vmatprep.subr.mxu0 0.0
        %373 = vmatpush1.msra.mxu0 0.0
        %374 = vmatprep.subr.mxu0 0.0
        %375 = vmatpush1.msra.mxu0 0.0
        %376 = vmatprep.subr.mxu0 0.0
        %377 = vmatpush1.msra.mxu0 0.0
        %378 = vmatprep.subr.mxu0 0.0
        %379 = vmatpush1.msra.mxu0 0.0
        %380 = vmatprep.subr.mxu0 0.0
        %381 = vmatpush1.msra.mxu0 0.0
        %382 = vmatprep.mubr.f32.mxu0 0.0
        %383 = vmatmul.mubr.f32.gmra.mrb[0].mxu0 %v296
        %v384 = vpop.f32.mrb[0].mxu0
        %v385 = vadd.f32 %v317, %v384
        %v386 = vpop.f32.mrb[0].mxu0
        %387 = vdwg.mxu0
        %v388 = vmax.f32 %v385, 0.0
        %v389 = vld [vmem:[#allocation6] sm:$0xff]
        %v390 = vld [vmem:[#allocation6 + $0x8] sm:$0xff]
        %v391 = vld [vmem:[#allocation6 + $0x10] sm:$0xff]
        %v392 = vld [vmem:[#allocation6 + $0x18] sm:$0xff]
        %v393 = vld [vmem:[#allocation6 + $0x20] sm:$0xff]
        %v394 = vld [vmem:[#allocation6 + $0x28] sm:$0xff]
        %v395 = vld [vmem:[#allocation6 + $0x30] sm:$0xff]
        %v396 = vld [vmem:[#allocation6 + $0x38] sm:$0xff]
        %v397 = vld [vmem:[#allocation6 + $0x40] sm:$0xff]
        %v398 = vld [vmem:[#allocation6 + $0x48] sm:$0xff]
        %v399 = vld [vmem:[#allocation6 + $0x50] sm:$0xff]
        %v400 = vld [vmem:[#allocation6 + $0x58] sm:$0xff]
        %v401 = vld [vmem:[#allocation6 + $0x60] sm:$0xff]
        %v402 = vld [vmem:[#allocation6 + $0x68] sm:$0xff]
        %v403 = vld [vmem:[#allocation6 + $0x70] sm:$0xff]
        %v404 = vld [vmem:[#allocation6 + $0x78] sm:$0xff]
        %v405 = vlaneseq
        %v406 = vshrl.u32 %v405, 7
        %v407 = vsub.s32 1, %v406
        %v408 = vrot.slane %v297, %v407
        %409 = vmatprep.subr.mxu0 0.0
        %410 = vmatpush1.msra.mxu0 %v389
        %411 = vmatprep.subr.mxu0 0.0
        %412 = vmatpush1.msra.mxu0 %v390
        %413 = vmatprep.subr.mxu0 0.0
        %414 = vmatpush1.msra.mxu0 %v391
        %415 = vmatprep.subr.mxu0 0.0
        %416 = vmatpush1.msra.mxu0 %v392
        %417 = vmatprep.subr.mxu0 0.0
        %418 = vmatpush1.msra.mxu0 %v393
        %419 = vmatprep.subr.mxu0 0.0
        %420 = vmatpush1.msra.mxu0 %v394
        %421 = vmatprep.subr.mxu0 0.0
        %422 = vmatpush1.msra.mxu0 %v395
        %423 = vmatprep.subr.mxu0 0.0
        %424 = vmatpush1.msra.mxu0 %v396
        %425 = vmatprep.subr.mxu0 0.0
        %426 = vmatpush1.msra.mxu0 %v397
        %427 = vmatprep.subr.mxu0 0.0
        %428 = vmatpush1.msra.mxu0 %v398
        %429 = vmatprep.subr.mxu0 0.0
        %430 = vmatpush1.msra.mxu0 %v399
        %431 = vmatprep.subr.mxu0 0.0
        %432 = vmatpush1.msra.mxu0 %v400
        %433 = vmatprep.subr.mxu0 0.0
        %434 = vmatpush1.msra.mxu0 %v401
        %435 = vmatprep.subr.mxu0 0.0
        %436 = vmatpush1.msra.mxu0 %v402
        %437 = vmatprep.subr.mxu0 0.0
        %438 = vmatpush1.msra.mxu0 %v403
        %439 = vmatprep.subr.mxu0 0.0
        %440 = vmatpush1.msra.mxu0 %v404
        %441 = vmatprep.subr.mxu0 0.0
        %442 = vmatpush1.msra.mxu0 0.0
        %443 = vmatprep.subr.mxu0 0.0
        %444 = vmatpush1.msra.mxu0 0.0
        %445 = vmatprep.subr.mxu0 0.0
        %446 = vmatpush1.msra.mxu0 0.0
        %447 = vmatprep.subr.mxu0 0.0
        %448 = vmatpush1.msra.mxu0 0.0
        %449 = vmatprep.subr.mxu0 0.0
        %450 = vmatpush1.msra.mxu0 0.0
        %451 = vmatprep.subr.mxu0 0.0
        %452 = vmatpush1.msra.mxu0 0.0
        %453 = vmatprep.subr.mxu0 0.0
        %454 = vmatpush1.msra.mxu0 0.0
        %455 = vmatprep.subr.mxu0 0.0
        %456 = vmatpush1.msra.mxu0 0.0
        %457 = vmatprep.subr.mxu0 0.0
        %458 = vmatpush1.msra.mxu0 0.0
        %459 = vmatprep.subr.mxu0 0.0
        %460 = vmatpush1.msra.mxu0 0.0
        %461 = vmatprep.subr.mxu0 0.0
        %462 = vmatpush1.msra.mxu0 0.0
        %463 = vmatprep.subr.mxu0 0.0
        %464 = vmatpush1.msra.mxu0 0.0
        %465 = vmatprep.subr.mxu0 0.0
        %466 = vmatpush1.msra.mxu0 0.0
        %467 = vmatprep.subr.mxu0 0.0
        %468 = vmatpush1.msra.mxu0 0.0
        %469 = vmatprep.subr.mxu0 0.0
        %470 = vmatpush1.msra.mxu0 0.0
        %471 = vmatprep.subr.mxu0 0.0
        %472 = vmatpush1.msra.mxu0 0.0
        %473 = vmatprep.mubr.f32.mxu0 0.0
        %474 = vmatmul.mubr.f32.gmra.mrb[0].mxu0 %v388
        %v475 = vpop.f32.mrb[0].mxu0
        %v476 = vadd.f32 %v408, %v475
        %v477 = vpop.f32.mrb[0].mxu0
        %478 = vdwg.mxu0
        %v479 = vmax.f32 %v476, 0.0
        %v480 = vld [vmem:[#allocation7] sm:$0xff]
        %v481 = vld [vmem:[#allocation7 + $0x8] sm:$0xff]
        %v482 = vld [vmem:[#allocation7 + $0x10] sm:$0xff]
        %v483 = vld [vmem:[#allocation7 + $0x18] sm:$0xff]
        %v484 = vld [vmem:[#allocation7 + $0x20] sm:$0xff]
        %v485 = vld [vmem:[#allocation7 + $0x28] sm:$0xff]
        %v486 = vld [vmem:[#allocation7 + $0x30] sm:$0xff]
        %v487 = vld [vmem:[#allocation7 + $0x38] sm:$0xff]
        %v488 = vld [vmem:[#allocation7 + $0x40] sm:$0xff]
        %v489 = vld [vmem:[#allocation7 + $0x48] sm:$0xff]
        %v490 = vld [vmem:[#allocation7 + $0x50] sm:$0xff]
        %v491 = vld [vmem:[#allocation7 + $0x58] sm:$0xff]
        %v492 = vld [vmem:[#allocation7 + $0x60] sm:$0xff]
        %v493 = vld [vmem:[#allocation7 + $0x68] sm:$0xff]
        %v494 = vld [vmem:[#allocation7 + $0x70] sm:$0xff]
        %v495 = vld [vmem:[#allocation7 + $0x78] sm:$0xff]
        %v496 = vlaneseq
        %v497 = vshrl.u32 %v496, 7
        %v498 = vsub.s32 2, %v497
        %v499 = vrot.slane %v297, %v498
        %500 = vmatprep.subr.mxu0 0.0
        %501 = vmatpush1.msra.mxu0 %v480
        %502 = vmatprep.subr.mxu0 0.0
        %503 = vmatpush1.msra.mxu0 %v481
        %504 = vmatprep.subr.mxu0 0.0
        %505 = vmatpush1.msra.mxu0 %v482
        %506 = vmatprep.subr.mxu0 0.0
        %507 = vmatpush1.msra.mxu0 %v483
        %508 = vmatprep.subr.mxu0 0.0
        %509 = vmatpush1.msra.mxu0 %v484
        %510 = vmatprep.subr.mxu0 0.0
        %511 = vmatpush1.msra.mxu0 %v485
        %512 = vmatprep.subr.mxu0 0.0
        %513 = vmatpush1.msra.mxu0 %v486
        %514 = vmatprep.subr.mxu0 0.0
        %515 = vmatpush1.msra.mxu0 %v487
        %516 = vmatprep.subr.mxu0 0.0
        %517 = vmatpush1.msra.mxu0 %v488
        %518 = vmatprep.subr.mxu0 0.0
        %519 = vmatpush1.msra.mxu0 %v489
        %520 = vmatprep.subr.mxu0 0.0
        %521 = vmatpush1.msra.mxu0 %v490
        %522 = vmatprep.subr.mxu0 0.0
        %523 = vmatpush1.msra.mxu0 %v491
        %524 = vmatprep.subr.mxu0 0.0
        %525 = vmatpush1.msra.mxu0 %v492
        %526 = vmatprep.subr.mxu0 0.0
        %527 = vmatpush1.msra.mxu0 %v493
        %528 = vmatprep.subr.mxu0 0.0
        %529 = vmatpush1.msra.mxu0 %v494
        %530 = vmatprep.subr.mxu0 0.0
        %531 = vmatpush1.msra.mxu0 %v495
        %532 = vmatprep.subr.mxu0 0.0
        %533 = vmatpush1.msra.mxu0 0.0
        %534 = vmatprep.subr.mxu0 0.0
        %535 = vmatpush1.msra.mxu0 0.0
        %536 = vmatprep.subr.mxu0 0.0
        %537 = vmatpush1.msra.mxu0 0.0
        %538 = vmatprep.subr.mxu0 0.0
        %539 = vmatpush1.msra.mxu0 0.0
        %540 = vmatprep.subr.mxu0 0.0
        %541 = vmatpush1.msra.mxu0 0.0
        %542 = vmatprep.subr.mxu0 0.0
        %543 = vmatpush1.msra.mxu0 0.0
        %544 = vmatprep.subr.mxu0 0.0
        %545 = vmatpush1.msra.mxu0 0.0
        %546 = vmatprep.subr.mxu0 0.0
        %547 = vmatpush1.msra.mxu0 0.0
        %548 = vmatprep.subr.mxu0 0.0
        %549 = vmatpush1.msra.mxu0 0.0
        %550 = vmatprep.subr.mxu0 0.0
        %551 = vmatpush1.msra.mxu0 0.0
        %552 = vmatprep.subr.mxu0 0.0
        %553 = vmatpush1.msra.mxu0 0.0
        %554 = vmatprep.subr.mxu0 0.0
        %555 = vmatpush1.msra.mxu0 0.0
        %556 = vmatprep.subr.mxu0 0.0
        %557 = vmatpush1.msra.mxu0 0.0
        %558 = vmatprep.subr.mxu0 0.0
        %559 = vmatpush1.msra.mxu0 0.0
        %560 = vmatprep.subr.mxu0 0.0
        %561 = vmatpush1.msra.mxu0 0.0
        %562 = vmatprep.subr.mxu0 0.0
        %563 = vmatpush1.msra.mxu0 0.0
        %564 = vmatprep.mubr.f32.mxu0 0.0
        %565 = vmatmul.mubr.f32.gmra.mrb[0].mxu0 %v479
        %v566 = vpop.f32.mrb[0].mxu0
        %v567 = vadd.f32 %v499, %v566
        %v568 = vpop.f32.mrb[0].mxu0
        %569 = vdwg.mxu0
        %vm570 = vcmask 7168
        %571 = vst.msk [vmem:[%s295] sm:$0xff] %vm570, %v567
        %p572 = scmp.lt.s32.totalorder %s21, 1
        %s573 = scalar_select %p572, %s21, 1
        %s574 = smul.addr %s573, 8
        %s575 = scalar_lea.vmem %s5, %s574
        // Predicated region
        $region61: #{mlp_decoder.1} parent=39 // pred_check
          %p576 = pneg %p149
        $region62: #{mlp_decoder.1} parent=39 // pred_check_branch
          %578 = sbr.rel (%p576) target = $region64
        $region63: #{mlp_decoder.1} parent=39 // pred_region
          _
        $region64: #{mlp_decoder.1} parent=39 // pred_fallthru
          _
      $region40: #{mlp_decoder.1} parent=5 // pred_fallthru
        _
      %p579 = scmp.le.s32.totalorder 2, %s16
      // Predicated region
      $region65: #{mlp_decoder.1} parent=5 // pred_check
        %p580 = pneg %p579
      $region66: #{mlp_decoder.1} parent=5 // pred_check_branch
        %582 = sbr.rel (%p580) target = $region68
      $region67: #{mlp_decoder.1} parent=5 // pred_region
        %s583 = ssub.s32 %s16, 2
        // Predicated region
        $region69: #{mlp_decoder.1} parent=67 // pred_check
          %p584 = pneg %p155
        $region70: #{mlp_decoder.1} parent=67 // pred_check_branch
          %586 = sbr.rel (%p584) target = $region72
        $region71: #{mlp_decoder.1} parent=67 // pred_region
          %p587 = scmp.lt.s32.totalorder %s22, 1
          %s588 = scalar_select %p587, %s22, 1
          %s589 = smul.addr %s588, 8
          %s590 = scalar_lea.vmem %s5, %s589
        $region72: #{mlp_decoder.1} parent=67 // pred_fallthru
          _
      $region68: #{mlp_decoder.1} parent=5 // pred_fallthru
        _
    $region6: #{mlp_decoder.1} parent=1 // loop_footer
      %s20 = sadd.s32 1, %s16
    $region7: #{mlp_decoder.1} parent=1 // loop_footer_branch
      %15 = sbr.rel target = $region3
    $region8: #{mlp_decoder.1} parent=1 // loop_exit
      _
    %591 = vsyncpa [#allocation3], 1
    %s592 = scalar_lea.sflag [#allocation3], 1
    %593 = vsyncpa %s592, 1
    %594 = vsyncpa [#allocation5], 1
    %595 = vsyncpa [#allocation8], 1

</llo_original>
